<compile_context>
chip_gen: v7x
topology: tpu7x:2x2x1
jax: 0.10.0
libtpu: 0.0.40
codegen_flags: <defaults>
</compile_context>

<pallas_src>
import functools

import jax
import jax.numpy as jnp
from jax import lax
from jax.experimental import pallas as pl
from jax.experimental.pallas import tpu as pltpu

_LANE = 128
_VMEM_BUDGET = 12 * 1024 * 1024   # keep under v5e's 16 MiB scoped-VMEM default
_MAX_TK = 8192


def _pick_tk(c, hw, max_tk=None):
    """Largest lane-multiple K tile that fits the VMEM budget (and <= padded HW)."""
    hw128 = ((hw + _LANE - 1) // _LANE) * _LANE
    out_bytes = 2 * c * c * 4                      # double-buffered (C, C) f32 output
    feat_budget = max(2 * 1024 * 1024, _VMEM_BUDGET - out_bytes)
    cap = feat_budget // (2 * 4 * c)               # double-buffered f32 (C, TK) tiles
    cap = max(512, min(_MAX_TK, (cap // _LANE) * _LANE))
    if max_tk is not None:
        cap = min(cap, max(_LANE, (max_tk // _LANE) * _LANE))
    return min(cap, hw128)


def _prep(x, max_tk=None):
    """(1, C, H, W) -> (C, HW) view (no cast, no pad) plus static tiling params."""
    b, c, h, w = x.shape
    assert b == 1, "PyTorch StyleLoss gram_matrix (view(c, h*w)) assumes batch == 1"
    hw = h * w
    feat = x.reshape(c, hw)                        # contiguous reshape: no data movement
    tk = _pick_tk(c, hw, max_tk)
    nblocks = -(-hw // tk)                         # ceil(hw / tk)
    num_cores = 2 if nblocks >= 2 else 1           # v7x: 2 TCs; cheap serial elsewhere
    steps_per_core = -(-nblocks // num_cores)
    return feat, c, hw, tk, nblocks, num_cores, steps_per_core


def _partial_gram_kernel(feat_ref, out_ref, *, tk, hw, steps_per_core, need_mask):
    """out(core) += F_tile @ F_tile^T with in-kernel bf16 cast + ragged-tail mask."""
    ci = pl.program_id(0)                          # core (parallel) axis
    k = pl.program_id(1)                           # K-tile (reduction) axis

    @pl.when(k == 0)
    def _():
        out_ref[...] = jnp.zeros_like(out_ref)

    f = feat_ref[...]                              # (C, TK), input's native dtype
    if need_mask:
        # Mask columns past the true HW extent: covers the partial last tile and
        # any fully out-of-range iteration whose block index was clamped below.
        start = (ci * steps_per_core + k) * tk
        lane = lax.broadcasted_iota(jnp.int32, f.shape, 1)
        f = jnp.where(lane < (hw - start), f, 0.0)
    fb = f.astype(jnp.bfloat16)                    # MXU feed; cast stays in-kernel
    # Contract lane-vs-lane: no explicit F^T materialization, f32 accumulation.
    out_ref[...] += lax.dot_general(
        fb, fb,
        dimension_numbers=(((1,), (1,)), ((), ())),
        preferred_element_type=jnp.float32)


def _partial_grams(feat, c, hw, tk, nblocks, num_cores, steps_per_core):
    """Unnormalized per-core partial grams: (num_cores, C, C) f32."""
    need_mask = (num_cores * steps_per_core * tk) != hw
    kernel = functools.partial(
        _partial_gram_kernel, tk=tk, hw=hw,
        steps_per_core=steps_per_core, need_mask=need_mask)

    def feat_index_map(ci, k):
        # Clamp so out-of-range iterations re-read the last valid block; their
        # contribution is zeroed by the in-kernel mask.
        return (0, jnp.minimum(ci * steps_per_core + k, nblocks - 1))

    return pl.pallas_call(
        kernel,
        out_shape=jax.ShapeDtypeStruct((num_cores, c, c), jnp.float32),
        grid_spec=pltpu.PrefetchScalarGridSpec(
            num_scalar_prefetch=0,
            grid=(num_cores, steps_per_core),
            in_specs=[pl.BlockSpec((c, tk), feat_index_map)],
            out_specs=pl.BlockSpec((None, c, c), lambda ci, k: (ci, 0, 0)),
        ),
        compiler_params=pltpu.CompilerParams(
            dimension_semantics=("parallel", "arbitrary")),
        cost_estimate=pl.CostEstimate(
            flops=2 * c * c * num_cores * steps_per_core * tk,
            transcendentals=0,
            bytes_accessed=c * hw * feat.dtype.itemsize + num_cores * c * c * 4),
    )(feat)


def _loss_epilogue_kernel(partials_ref, target_ref, loss_ref, *,
                          num_cores, inv_chw, inv_cc):
    """loss = mean((sum_cores(partials) * inv_chw - target)^2), single shot."""
    g = partials_ref[0]
    for i in range(1, num_cores):                  # static unroll over <= 2 cores
        g = g + partials_ref[i]
    diff = g * inv_chw - target_ref[...]
    sq = diff * diff
    s = jnp.sum(sq, axis=1, keepdims=True)         # (C, 1)
    s = jnp.sum(s, axis=0, keepdims=True)          # (1, 1)
    loss_ref[...] = s * inv_cc


def gram_matrix(x, max_tk=None):
    """G = (F @ F^T) / (c*h*w) for F = x.reshape(c, h*w); returns (C, C) f32."""
    feat, c, hw, tk, nb, nc, spc = _prep(x, max_tk)
    partials = _partial_grams(feat, c, hw, tk, nb, nc, spc)
    return jnp.sum(partials, axis=0) * (1.0 / float(c * hw))


def _style_loss(x, target, max_tk=None):
    feat, c, hw, tk, nb, nc, spc = _prep(x, max_tk)
    partials = _partial_grams(feat, c, hw, tk, nb, nc, spc)
    kernel = functools.partial(
        _loss_epilogue_kernel, num_cores=nc,
        inv_chw=1.0 / float(c * hw), inv_cc=1.0 / float(c * c))
    loss = pl.pallas_call(
        kernel,
        out_shape=jax.ShapeDtypeStruct((1, 1), jnp.float32),
    )(partials, target)
    return loss[0, 0]


class StyleLoss:
    """JAX/Pallas port of the PyTorch StyleLoss module (transparent loss layer)."""

    def __init__(self, target_feature, max_tk=None):
        # target gram is computed once (detached constant), f32
        self.target = jax.block_until_ready(gram_matrix(target_feature, max_tk))
        # jit so partial-gram kernel + epilogue kernel go out as one dispatch
        # TODO(synk): when several style layers are evaluated per step, batch their
        # (tiny) gram kernels into one pallas_call instead of one call per layer.
        self._loss_fn = jax.jit(functools.partial(_style_loss, max_tk=max_tk))
        self.loss = None

    def __call__(self, x):
        assert x.shape[1] == self.target.shape[0], (
            "input channel count must match the stored target gram")
        self.loss = self._loss_fn(x, self.target)
        return x                                   # forward returns input unchanged


def _reference(x, target_feature, *, bf16):
    """Pure-JAX reference of the PyTorch semantics (optionally bf16 features)."""
    def gram(t):
        _, c, h, w = t.shape
        f = t.reshape(c, h * w)
        if bf16:
            f = f.astype(jnp.bfloat16)
        f = f.astype(jnp.float32)
        g = jnp.dot(f, f.T, precision=lax.Precision.HIGHEST)
        return g / (c * h * w)
    G = gram(x)
    T = gram(target_feature)
    return jnp.mean((G - T) ** 2)


if __name__ == "__main__":
    key = jax.random.PRNGKey(0)

    # (shape, max_tk): exercise single-tile, multi-tile + ragged-tail mask, and
    # the clamped out-of-range iteration of the 2-core split.
    cases = [
        ((1, 8, 16, 48), None),   # HW=768  -> single 768-wide tile, 1 core
        ((1, 8, 96, 96), None),   # HW=9216 -> TK=8192, 2 cores x 1 step, masked tail
        ((1, 8, 16, 45), 256),    # HW=720  -> TK=256, 3 blocks -> 2 cores x 2 steps,
                                  #            masked tail + clamped OOB iteration
    ]

    for idx, (shape, max_tk) in enumerate(cases):
        k_tgt, k_in, key = jax.random.split(key, 3)
        target_feature = jax.random.normal(k_tgt, shape, dtype=jnp.float32)
        x = jax.random.normal(k_in, shape, dtype=jnp.float32)

        module = StyleLoss(target_feature, max_tk=max_tk)
        out = module(x)
        out = jax.block_until_ready(out)
        loss = jax.block_until_ready(module.loss)

        # forward is a transparent loss layer
        assert out.shape == x.shape and jnp.allclose(out, x)

        # tight check against a bf16-matched reference (the kernel's MXU precision)
        ref_bf16 = _reference(x, target_feature, bf16=True)
        assert jnp.allclose(loss, ref_bf16, rtol=2e-3, atol=1e-8), (idx, loss, ref_bf16)

        # loose check against the pure-f32 PyTorch-semantics reference
        ref_f32 = _reference(x, target_feature, bf16=False)
        assert jnp.allclose(loss, ref_f32, rtol=5e-2, atol=1e-5), (idx, loss, ref_f32)

    print("KERNEL_OK")
</pallas_src>

<mosaic_0001>
module attributes {stable_mosaic.version = 11 : i64} {
  func.func @_partial_gram_kernel(%arg0: i32, %arg1: i32, %arg2: memref<8x768xf32, #tpu.memory_space<vmem>>, %arg3: memref<1x8x8xf32, #tpu.memory_space<vmem>>) attributes {dimension_semantics = [#tpu.dimension_semantics<parallel>, #tpu.dimension_semantics<arbitrary>], iteration_bounds = array<i64: 1, 1>, scalar_prefetch = 0 : i64, scratch_operands = 0 : i64, tpu.core_type = #tpu.core_type<tc>, window_params = [{transform_indices = @transform_0, window_bounds = array<i64: 8, 768>}, {transform_indices = @transform_1, window_bounds = array<i64: 1, 8, 8>}]} {
    %c0_i32 = arith.constant 0 : i32
    %0 = arith.cmpi eq, %arg1, %c0_i32 : i32
    %1 = arith.extui %0 : i1 to i32
    %c0_i32_0 = arith.constant 0 : i32
    %2 = arith.cmpi ne, %1, %c0_i32_0 : i32
    scf.if %2 {
      %cst_8 = arith.constant 0.000000e+00 : f32
      %12 = vector.broadcast %cst_8 : f32 to vector<8x8xf32>
      %c0_9 = arith.constant 0 : index
      %c0_10 = arith.constant 0 : index
      %c0_11 = arith.constant 0 : index
      %13 = vector.load %arg3[%c0_9, %c0_10, %c0_11] : memref<1x8x8xf32, #tpu.memory_space<vmem>>, vector<1x8x8xf32>
      %14 = vector.shape_cast %13 : vector<1x8x8xf32> to vector<8x8xf32>
      %15 = vector.shape_cast %12 : vector<8x8xf32> to vector<1x8x8xf32>
      tpu.vector_store %arg3[%c0_9, %c0_10, %c0_11], %15 {strides = array<i32>} : memref<1x8x8xf32, #tpu.memory_space<vmem>>, vector<1x8x8xf32>,
    } else {
    }
    %c0 = arith.constant 0 : index
    %c0_1 = arith.constant 0 : index
    %3 = vector.load %arg2[%c0, %c0_1] : memref<8x768xf32, #tpu.memory_space<vmem>>, vector<8x768xf32>
    %4 = arith.truncf %3 : vector<8x768xf32> to vector<8x768xbf16>
    %c0_2 = arith.constant 0 : index
    %c0_3 = arith.constant 0 : index
    %c0_4 = arith.constant 0 : index
    %5 = vector.load %arg3[%c0_2, %c0_3, %c0_4] : memref<1x8x8xf32, #tpu.memory_space<vmem>>, vector<1x8x8xf32>
    %6 = vector.shape_cast %5 : vector<1x8x8xf32> to vector<8x8xf32>
    %cst = arith.constant dense<0.000000e+00> : vector<8x8xf32>
    %7 = tpu.matmul %4, %4, %cst {dimension_numbers = #tpu.dot_dimension_numbers<[1], [1], [0], [0], [0, 0, 1, 0], [], []>} : vector<8x768xbf16>, vector<8x768xbf16>, vector<8x8xf32> -> vector<8x8xf32>
    %8 = arith.addf %6, %7 : vector<8x8xf32>
    %c0_5 = arith.constant 0 : index
    %c0_6 = arith.constant 0 : index
    %c0_7 = arith.constant 0 : index
    %9 = vector.load %arg3[%c0_5, %c0_6, %c0_7] : memref<1x8x8xf32, #tpu.memory_space<vmem>>, vector<1x8x8xf32>
    %10 = vector.shape_cast %9 : vector<1x8x8xf32> to vector<8x8xf32>
    %11 = vector.shape_cast %8 : vector<8x8xf32> to vector<1x8x8xf32>
    tpu.vector_store %arg3[%c0_5, %c0_6, %c0_7], %11 {strides = array<i32>} : memref<1x8x8xf32, #tpu.memory_space<vmem>>, vector<1x8x8xf32>,
    return
  }
  func.func @transform_0(%arg0: i32, %arg1: i32) -> (i32, i32) {
    %c1_i32 = arith.constant 1 : i32
    %0 = arith.muli %arg0, %c1_i32 : i32
    %1 = arith.addi %0, %arg1 : i32
    %c0_i32 = arith.constant 0 : i32
    %2 = arith.minsi %1, %c0_i32 : i32
    %c0_i32_0 = arith.constant 0 : i32
    %c0_i32_1 = arith.constant 0 : i32
    return %c0_i32_0, %2 : i32, i32
  }
  func.func @transform_1(%arg0: i32, %arg1: i32) -> (i32, i32, i32) {
    %c0_i32 = arith.constant 0 : i32
    %c0_i32_0 = arith.constant 0 : i32
    %c0_i32_1 = arith.constant 0 : i32
    return %arg0, %c0_i32, %c0_i32_0 : i32, i32, i32
  }
}

</mosaic_0001>

<llo_original>
// kernel: tpu_custom_call.1
$region0: #{tpu_custom_call.1}
  #allocation0 [shape = 'u32[]', space=smem, size = 0x4, offset = 0x4, fixed_abs, tag = 'smem constant byte address 0x4 - core index']
  #allocation1 [shape = 'u32[144,128]{1,0:T(1,128)}', space=vmem, size = 0x12000, scoped, tag = 'internal scratch']
  %s0 = inlined_call_operand.hbm [shape: f32[8,768], index: 0, kind: input, shape index: {}]
  %s1 = inlined_call_operand.hbm [shape: f32[1,8,8], index: 1, kind: output, shape index: {}]
  %s2 = sld [smem:[#allocation0]]
  $region22: #{tpu_custom_call.1} parent=0
    _
  %s4 = ssub.s32 1, %s2
  %s5 = scalar_select 0, %s4, %s2
  $region1: #{tpu_custom_call.1} parent=0
    #allocation2 [shape = 'u8[24576]{0}', space=vmem, size = 0x6000, scoped, tag = 'input window, operand 0, single buffered']
    #allocation3 [shape = 's32[1]{0}', space=sflag, size = 0x4, scoped, tag = 'scoped memory for tpu_custom_call.1']
    #allocation4 [shape = 's32[1]{0}', space=sflag, size = 0x4, scoped, tag = 'scoped memory for tpu_custom_call.1']
    #allocation5 [shape = 'u8[4096]{0}', space=vmem, size = 0x1000, scoped, tag = 'output window, operand 0, single buffered']
    %6 = vsyncpa [#allocation3], 0
    %7 = vsyncpa [#allocation4], 0
    // Predicated region
    $region2: #{tpu_custom_call.1} parent=1 // pred_check
      _
    $region3: #{tpu_custom_call.1} parent=1 // pred_check_branch
      %9 = sbr.rel (0) target = $region5
    $region4: #{tpu_custom_call.1} parent=1 // pred_region
      %s10 = sadd.s32 0, 0
      %p11 = scmp.lt.s32.totalorder %s10, 0
      %s12 = scalar_select %p11, %s10, 0
      %s13 = smul.u32 6, %s12
      %s15 = ssub.s32 768, 768
      %16 = vsyncadd [#allocation3], %s15
      %s17 = smul.addr %s13, 128
      %s18 = scalar_lea.hbm %s0, %s17
      %s20 = sshll.u32 [#allocation2], 4
      %s21 = int_to_ptr.vmem [resolvable:$true] %s20
      %23 = dma.hbm_to_vmem [thread:$0]  %s18, 768, %s21, [#allocation3]
    $region5: #{tpu_custom_call.1} parent=1 // pred_fallthru
      _
    // Predicated region
    $region6: #{tpu_custom_call.1} parent=1 // pred_check
      _
    $region7: #{tpu_custom_call.1} parent=1 // pred_check_branch
      %25 = sbr.rel (0) target = $region9
    $region8: #{tpu_custom_call.1} parent=1 // pred_region
      %26 = dma.done [#allocation3], 768
    $region9: #{tpu_custom_call.1} parent=1 // pred_fallthru
      _
    %s27 = sadd.s32 0, 0
    %p28 = scmp.lt.s32.totalorder %s27, 0
    %s29 = scalar_select %p28, %s27, 0
    %s30 = smul.u32 6, %s29
    %p32 = scmp.eq.s32.totalorder 0, 0
    // Predicated region
    $region10: #{tpu_custom_call.1} parent=1 // pred_check
      %p33 = pneg %p32
    $region11: #{tpu_custom_call.1} parent=1 // pred_check_branch
      %35 = sbr.rel (%p33) target = $region13
    $region12: #{tpu_custom_call.1} parent=1 // pred_region
      %vm36 = vcmask 64512
      %37 = vst.msk [vmem:[#allocation5] sm:$0xff] %vm36, 0.0
    $region13: #{tpu_custom_call.1} parent=1 // pred_fallthru
      _
    %v38 = vld [vmem:[#allocation2] sm:$0xff]
    %v39 = vld [vmem:[#allocation2 + $0x8] sm:$0xff]
    %v40 = vld [vmem:[#allocation2 + $0x10] sm:$0xff]
    %v41 = vld [vmem:[#allocation2 + $0x18] sm:$0xff]
    %v42 = vld [vmem:[#allocation2 + $0x20] sm:$0xff]
    %v43 = vld [vmem:[#allocation2 + $0x28] sm:$0xff]
    %v44 = vpack.c.bf16 %v38, %v38
    %v45 = vpack.c.bf16 %v39, %v39
    %v46 = vpack.c.bf16 %v40, %v40
    %v47 = vpack.c.bf16 %v41, %v41
    %v48 = vpack.c.bf16 %v42, %v42
    %v49 = vpack.c.bf16 %v43, %v43
    %v50 = vld [vmem:[#allocation5] sm:$0xff]
    %51 = vmatprep.subr.bf16.mxu0 %v45
    %52 = vmatpush1.bf16.xpose.msra.mxu0 %v44
    %53 = vmatprep.subr.bf16.mxu0 0
    %54 = vmatpush1.bf16.xpose.msra.mxu0 0
    %55 = vmatprep.subr.bf16.mxu0 0
    %56 = vmatpush1.bf16.xpose.msra.mxu0 0
    %57 = vmatprep.subr.bf16.mxu0 0
    %58 = vmatpush1.bf16.xpose.msra.mxu0 0
    %59 = vmatprep.subr.bf16.mxu0 0
    %60 = vmatpush1.bf16.xpose.msra.mxu0 0
    %61 = vmatprep.subr.bf16.mxu0 0
    %62 = vmatpush1.bf16.xpose.msra.mxu0 0
    %63 = vmatprep.subr.bf16.mxu0 0
    %64 = vmatpush1.bf16.xpose.msra.mxu0 0
    %65 = vmatprep.subr.bf16.mxu0 0
    %66 = vmatpush1.bf16.xpose.msra.mxu0 0
    %67 = vmatprep.subr.bf16.mxu0 0
    %68 = vmatpush1.bf16.xpose.msra.mxu0 0
    %69 = vmatprep.subr.bf16.mxu0 0
    %70 = vmatpush1.bf16.xpose.msra.mxu0 0
    %71 = vmatprep.subr.bf16.mxu0 0
    %72 = vmatpush1.bf16.xpose.msra.mxu0 0
    %73 = vmatprep.subr.bf16.mxu0 0
    %74 = vmatpush1.bf16.xpose.msra.mxu0 0
    %75 = vmatprep.subr.bf16.mxu0 0
    %76 = vmatpush1.bf16.xpose.msra.mxu0 0
    %77 = vmatprep.subr.bf16.mxu0 0
    %78 = vmatpush1.bf16.xpose.msra.mxu0 0
    %79 = vmatprep.subr.bf16.mxu0 0
    %80 = vmatpush1.bf16.xpose.msra.mxu0 0
    %81 = vmatprep.subr.bf16.mxu0 0
    %82 = vmatpush1.bf16.xpose.msra.mxu0 0
    %83 = vmatprep.mubr.bf16.mxu0 %v45
    %84 = vmatmul.mubr.bf16.gmra.mrb[0].mxu0 %v44
    %v85 = vpop.f32.mrb[0].mxu0
    %v86 = vadd.f32 0.0, %v85
    %v87 = vpop.f32.mrb[0].mxu0
    %v88 = vpop.f32.mrb[0].mxu0
    %v89 = vpop.f32.mrb[0].mxu0
    %90 = vdwg.mxu0
    %91 = vmatprep.subr.bf16.mxu0 %v47
    %92 = vmatpush1.bf16.xpose.msra.mxu0 %v46
    %93 = vmatprep.subr.bf16.mxu0 0
    %94 = vmatpush1.bf16.xpose.msra.mxu0 0
    %95 = vmatprep.subr.bf16.mxu0 0
    %96 = vmatpush1.bf16.xpose.msra.mxu0 0
    %97 = vmatprep.subr.bf16.mxu0 0
    %98 = vmatpush1.bf16.xpose.msra.mxu0 0
    %99 = vmatprep.subr.bf16.mxu0 0
    %100 = vmatpush1.bf16.xpose.msra.mxu0 0
    %101 = vmatprep.subr.bf16.mxu0 0
    %102 = vmatpush1.bf16.xpose.msra.mxu0 0
    %103 = vmatprep.subr.bf16.mxu0 0
    %104 = vmatpush1.bf16.xpose.msra.mxu0 0
    %105 = vmatprep.subr.bf16.mxu0 0
    %106 = vmatpush1.bf16.xpose.msra.mxu0 0
    %107 = vmatprep.subr.bf16.mxu0 0
    %108 = vmatpush1.bf16.xpose.msra.mxu0 0
    %109 = vmatprep.subr.bf16.mxu0 0
    %110 = vmatpush1.bf16.xpose.msra.mxu0 0
    %111 = vmatprep.subr.bf16.mxu0 0
    %112 = vmatpush1.bf16.xpose.msra.mxu0 0
    %113 = vmatprep.subr.bf16.mxu0 0
    %114 = vmatpush1.bf16.xpose.msra.mxu0 0
    %115 = vmatprep.subr.bf16.mxu0 0
    %116 = vmatpush1.bf16.xpose.msra.mxu0 0
    %117 = vmatprep.subr.bf16.mxu0 0
    %118 = vmatpush1.bf16.xpose.msra.mxu0 0
    %119 = vmatprep.subr.bf16.mxu0 0
    %120 = vmatpush1.bf16.xpose.msra.mxu0 0
    %121 = vmatprep.subr.bf16.mxu0 0
    %122 = vmatpush1.bf16.xpose.msra.mxu0 0
    %123 = vmatprep.mubr.bf16.mxu0 %v47
    %124 = vmatmul.mubr.bf16.gmra.mrb[0].mxu0 %v46
    %v125 = vpop.f32.mrb[0].mxu0
    %v126 = vadd.f32 %v86, %v125
    %v127 = vpop.f32.mrb[0].mxu0
    %v128 = vpop.f32.mrb[0].mxu0
    %v129 = vpop.f32.mrb[0].mxu0
    %130 = vdwg.mxu0
    %131 = vmatprep.subr.bf16.mxu0 %v49
    %132 = vmatpush1.bf16.xpose.msra.mxu0 %v48
    %133 = vmatprep.subr.bf16.mxu0 0
    %134 = vmatpush1.bf16.xpose.msra.mxu0 0
    %135 = vmatprep.subr.bf16.mxu0 0
    %136 = vmatpush1.bf16.xpose.msra.mxu0 0
    %137 = vmatprep.subr.bf16.mxu0 0
    %138 = vmatpush1.bf16.xpose.msra.mxu0 0
    %139 = vmatprep.subr.bf16.mxu0 0
    %140 = vmatpush1.bf16.xpose.msra.mxu0 0
    %141 = vmatprep.subr.bf16.mxu0 0
    %142 = vmatpush1.bf16.xpose.msra.mxu0 0
    %143 = vmatprep.subr.bf16.mxu0 0
    %144 = vmatpush1.bf16.xpose.msra.mxu0 0
    %145 = vmatprep.subr.bf16.mxu0 0
    %146 = vmatpush1.bf16.xpose.msra.mxu0 0
    %147 = vmatprep.subr.bf16.mxu0 0
    %148 = vmatpush1.bf16.xpose.msra.mxu0 0
    %149 = vmatprep.subr.bf16.mxu0 0
    %150 = vmatpush1.bf16.xpose.msra.mxu0 0
    %151 = vmatprep.subr.bf16.mxu0 0
    %152 = vmatpush1.bf16.xpose.msra.mxu0 0
    %153 = vmatprep.subr.bf16.mxu0 0
    %154 = vmatpush1.bf16.xpose.msra.mxu0 0
    %155 = vmatprep.subr.bf16.mxu0 0
    %156 = vmatpush1.bf16.xpose.msra.mxu0 0
    %157 = vmatprep.subr.bf16.mxu0 0
    %158 = vmatpush1.bf16.xpose.msra.mxu0 0
    %159 = vmatprep.subr.bf16.mxu0 0
    %160 = vmatpush1.bf16.xpose.msra.mxu0 0
    %161 = vmatprep.subr.bf16.mxu0 0
    %162 = vmatpush1.bf16.xpose.msra.mxu0 0
    %163 = vmatprep.mubr.bf16.mxu0 %v49
    %164 = vmatmul.mubr.bf16.gmra.mrb[0].mxu0 %v48
    %v165 = vpop.f32.mrb[0].mxu0
    %v166 = vadd.f32 %v126, %v165
    %v167 = vpop.f32.mrb[0].mxu0
    %v168 = vpop.f32.mrb[0].mxu0
    %v169 = vpop.f32.mrb[0].mxu0
    %170 = vdwg.mxu0
    %v171 = vadd.f32 %v50, %v166
    %vm172 = vcmask 64512
    %173 = vst.msk [vmem:[#allocation5] sm:$0xff] %vm172, %v171
    // Predicated region
    $region14: #{tpu_custom_call.1} parent=1 // pred_check
      _
    $region15: #{tpu_custom_call.1} parent=1 // pred_check_branch
      %175 = sbr.rel (0) target = $region17
    $region16: #{tpu_custom_call.1} parent=1 // pred_region
      %s177 = ssub.s32 128, 128
      %178 = vsyncadd [#allocation4], %s177
      %s180 = sshll.u32 [#allocation5], 4
      %s181 = int_to_ptr.vmem [resolvable:$true] %s180
      %183 = dma.vmem_to_hbm [thread:$0]  %s181, 128, %s1, [#allocation4]
    $region17: #{tpu_custom_call.1} parent=1 // pred_fallthru
      _
    // Predicated region
    $region18: #{tpu_custom_call.1} parent=1 // pred_check
      _
    $region19: #{tpu_custom_call.1} parent=1 // pred_check_branch
      %185 = sbr.rel (0) target = $region21
    $region20: #{tpu_custom_call.1} parent=1 // pred_region
      %186 = dma.done [#allocation4], 128
    $region21: #{tpu_custom_call.1} parent=1 // pred_fallthru
      _
    %187 = vsyncpa [#allocation3], 1
    %188 = vsyncpa [#allocation4], 1

</llo_original>
